<compile_context>
chip_gen: v6e
topology: v6e:2x2x1
jax: 0.10.0
libtpu: 0.0.40
codegen_flags: <defaults>
</compile_context>

<pallas_src>
import functools

import jax
import jax.numpy as jnp
from jax.experimental import pallas as pl
from jax.experimental.pallas import tpu as pltpu


# ---------------------------------------------------------------------------
# Kernels
# ---------------------------------------------------------------------------

def _head_kernel_full_f(x_ref, w_ref, b_ref, o_ref):
    """Common case: whole feature dim resident. No scratch, no pl.when."""
    # x_ref: (bB, T, F)  w_ref: (F, C)  b_ref: (1, C)  o_ref: (bB, C)
    inv_t = jnp.float32(1.0 / x_ref.shape[1])
    # Sum over the sequence axis with f32 accumulation, without materializing a
    # full f32 copy of the (bB, T, F) block; the 1/T mean scale is hoisted.
    x_sum = jnp.sum(x_ref[...], axis=1, dtype=jnp.float32)            # (bB, F)
    # Feed the MXU in f32: with C = n_classes (tiny) the matmul is invisible
    # next to the HBM stream, and f32 avoids bf16 rounding of the T-sum.
    y = jnp.dot(x_sum, w_ref[...].astype(jnp.float32),
                preferred_element_type=jnp.float32)
    y = y * inv_t + b_ref[...].astype(jnp.float32)
    # TODO(synk): nn.Dropout is identity in eval/inference; training-mode
    # stochastic dropout is intentionally not applied here.
    o_ref[...] = y.astype(o_ref.dtype)


def _head_kernel_split_f(x_ref, w_ref, b_ref, o_ref, acc_ref, *, block_f):
    """Fallback when a full-F x block does not fit VMEM (very large T*F)."""
    # x_ref: (bB, T, bF)  w_ref: (F, C) resident  b_ref: (1, C)
    # o_ref: (bB, C)      acc_ref: (bB, C) f32 scratch (persists across k)
    k = pl.program_id(1)

    @pl.when(k == 0)
    def _():
        acc_ref[...] = jnp.zeros_like(acc_ref)

    x_sum = jnp.sum(x_ref[...], axis=1, dtype=jnp.float32)            # (bB, bF)
    off = pl.multiple_of(k * block_f, 128)
    w_blk = w_ref[pl.ds(off, block_f), :].astype(jnp.float32)
    acc_ref[...] += jnp.dot(x_sum, w_blk, preferred_element_type=jnp.float32)

    @pl.when(k == pl.num_programs(1) - 1)
    def _():
        inv_t = jnp.float32(1.0 / x_ref.shape[1])
        y = acc_ref[...] * inv_t + b_ref[...].astype(jnp.float32)
        o_ref[...] = y.astype(o_ref.dtype)


# ---------------------------------------------------------------------------
# Tile selection
# ---------------------------------------------------------------------------

def _vmem_capacity_bytes():
    """Physical VMEM per core; conservative v7x fallback if the query fails."""
    try:
        return int(pltpu.get_tpu_info().vmem_capacity_bytes)
    except Exception:
        return 64 * 1024 * 1024


def _tile_candidates(n, step):
    """Divisors of n that are multiples of `step` (plus n itself), descending."""
    cands = [n]
    if n >= step:
        d = (n // step) * step
        while d >= step:
            if d != n and n % d == 0:
                cands.append(d)
            d -= step
    return cands


def _pick_tiles(B, T, F, C, x_item, w_item, out_item, budget, want_two_b_tiles):
    """Full-F-first tiling: shrink bB before splitting F."""
    b_cands = _tile_candidates(B, 8)
    f_cands = _tile_candidates(F, 128)

    if want_two_b_tiles:
        # Keep >=2 batch tiles so both v7x TensorCores get work; near-free on
        # single-TC chips (one extra ~0.35 us grid step vs multi-MiB DMAs).
        capped = [c for c in b_cands if B // c >= 2]
        if capped:
            b_cands = capped

    def working_set(bB, bF):
        x_blk = 2 * bB * T * bF * x_item        # double-buffered x input
        w_blk = 2 * F * C * w_item              # resident weight (tiny)
        o_blk = 2 * bB * C * out_item           # double-buffered output
        b_blk = 2 * C * 4                       # bias
        acc = bB * C * 4 if bF < F else 0       # f32 accumulator (split path)
        return x_blk + w_blk + o_blk + b_blk + acc

    # 1) Prefer full-F contiguous x blocks: largest bB that fits the budget.
    for bB in b_cands:
        if working_set(bB, F) <= budget:
            return bB, F
    # 2) Only split F once bB is already at its minimum.
    bB_min = b_cands[-1]
    for bF in f_cands:
        if working_set(bB_min, bF) <= budget:
            return bB_min, bF
    # 3) Terminal fallback: smallest legal tiles (compiler gets the final say).
    return bB_min, f_cands[-1]


# ---------------------------------------------------------------------------
# Wrapper
# ---------------------------------------------------------------------------

def classification_head(x, w_t, b):
    """MOMENT ClassificationHead forward: mean over dim=1, (eval) dropout, linear.

    x   : (B, T, F) with F = n_channels * d_model   (reduction='concat')
    w_t : (F, C)    = linear.weight.T
    b   : (C,)      = linear.bias
    returns (B, C)
    """
    B, T, F = x.shape
    C = w_t.shape[1]
    b2d = b.reshape(1, C)

    vmem_cap = _vmem_capacity_bytes()
    vmem_limit = (vmem_cap * 3) // 4            # ~48 MiB on v7x, ~96 MiB on v5e/v6e
    budget = (vmem_limit * 4) // 5              # headroom for pipeline bookkeeping

    bB, bF = _pick_tiles(
        B, T, F, C,
        x_item=x.dtype.itemsize, w_item=w_t.dtype.itemsize,
        out_item=x.dtype.itemsize, budget=budget,
        want_two_b_tiles=(B >= 16))

    cost = pl.CostEstimate(
        flops=2 * B * T * F + 2 * B * F * C,
        transcendentals=0,
        bytes_accessed=(B * T * F * x.dtype.itemsize
                        + F * C * w_t.dtype.itemsize
                        + B * C * x.dtype.itemsize))

    if bF == F:
        # Common case: no reduction grid axis, no scratch.
        grid = (B // bB,)
        return pl.pallas_call(
            _head_kernel_full_f,
            out_shape=jax.ShapeDtypeStruct((B, C), x.dtype),
            grid=grid,
            in_specs=[
                pl.BlockSpec((bB, T, F), lambda i: (i, 0, 0)),
                pl.BlockSpec((F, C), lambda i: (0, 0)),      # resident weight
                pl.BlockSpec((1, C), lambda i: (0, 0)),      # resident bias
            ],
            out_specs=pl.BlockSpec((bB, C), lambda i: (i, 0)),
            compiler_params=pltpu.CompilerParams(
                dimension_semantics=("parallel",),
                vmem_limit_bytes=vmem_limit),
            cost_estimate=cost,
        )(x, w_t, b2d)

    # Split-F fallback (only when even a bB=8 full-F block overflows VMEM).
    # TODO(synk): if this path ever dominates on v7x, bump the x input to
    # pipeline_mode=pl.Buffered(3) to hide per-step DMA issue overhead.
    grid = (B // bB, F // bF)
    return pl.pallas_call(
        functools.partial(_head_kernel_split_f, block_f=bF),
        out_shape=jax.ShapeDtypeStruct((B, C), x.dtype),
        grid=grid,
        in_specs=[
            pl.BlockSpec((bB, T, bF), lambda i, k: (i, 0, k)),
            pl.BlockSpec((F, C), lambda i, k: (0, 0)),       # resident full weight
            pl.BlockSpec((1, C), lambda i, k: (0, 0)),       # resident bias
        ],
        out_specs=pl.BlockSpec((bB, C), lambda i, k: (i, 0)),
        scratch_shapes=[pltpu.VMEM((bB, C), jnp.float32)],
        compiler_params=pltpu.CompilerParams(
            dimension_semantics=("parallel", "arbitrary"),
            vmem_limit_bytes=vmem_limit),
        cost_estimate=cost,
    )(x, w_t, b2d)


if __name__ == "__main__":
    # Small shapes consistent with the module:
    # n_channels=4, d_model=32 -> concat feature dim F = 128, n_classes=2
    B, T = 2, 8
    n_channels, d_model, n_classes = 4, 32, 2
    F = n_channels * d_model

    key = jax.random.PRNGKey(0)
    kx, kw, kb = jax.random.split(key, 3)

    x = jax.random.normal(kx, (B, T, F), dtype=jnp.float32)
    # nn.Linear(F, n_classes): weight (n_classes, F), bias (n_classes,)
    w = jax.random.normal(kw, (n_classes, F), dtype=jnp.float32) * (1.0 / jnp.sqrt(F))
    b = jax.random.normal(kb, (n_classes,), dtype=jnp.float32) * 0.01

    y = classification_head(x, w.T, b)
    jax.block_until_ready(y)

    # Reference check in plain JAX
    y_ref = jnp.mean(x, axis=1) @ w.T + b
    assert jnp.allclose(y, y_ref, atol=1e-5, rtol=1e-5), "mismatch vs reference"

    print("KERNEL_OK")
</pallas_src>

<mosaic_0001>
module attributes {stable_mosaic.version = 11 : i64} {
  func.func @_head_kernel_full_f(%arg0: i32, %arg1: memref<2x8x128xf32, #tpu.memory_space<vmem>>, %arg2: memref<128x2xf32, #tpu.memory_space<vmem>>, %arg3: memref<1x2xf32, #tpu.memory_space<vmem>>, %arg4: memref<2x2xf32, #tpu.memory_space<vmem>>) attributes {dimension_semantics = [#tpu.dimension_semantics<parallel>], iteration_bounds = array<i64: 1>, scalar_prefetch = 0 : i64, scratch_operands = 0 : i64, tpu.core_type = #tpu.core_type<tc>, window_params = [{transform_indices = @transform_0, window_bounds = array<i64: 2, 8, 128>}, {pipeline_mode = #tpu.pipeline_mode<synchronous>, transform_indices = @transform_1, window_bounds = array<i64: 128, 2>}, {pipeline_mode = #tpu.pipeline_mode<synchronous>, transform_indices = @transform_2, window_bounds = array<i64: 1, 2>}, {transform_indices = @transform_3, window_bounds = array<i64: 2, 2>}]} {
    %c0 = arith.constant 0 : index
    %c0_0 = arith.constant 0 : index
    %c0_1 = arith.constant 0 : index
    %0 = vector.load %arg1[%c0, %c0_0, %c0_1] : memref<2x8x128xf32, #tpu.memory_space<vmem>>, vector<2x8x128xf32>
    %cst = arith.constant dense<0.000000e+00> : vector<2x128xf32>
    %1 = vector.multi_reduction <add>, %0, %cst [1] : vector<2x8x128xf32> to vector<2x128xf32>
    %c0_2 = arith.constant 0 : index
    %c0_3 = arith.constant 0 : index
    %2 = vector.load %arg2[%c0_2, %c0_3] : memref<128x2xf32, #tpu.memory_space<vmem>>, vector<128x2xf32>
    %cst_4 = arith.constant dense<0.000000e+00> : vector<2x2xf32>
    %3 = tpu.matmul %1, %2, %cst_4 {dimension_numbers = #tpu.dot_dimension_numbers<[1], [0], [0], [1], [0, 0, 1, 1], [], []>} : vector<2x128xf32>, vector<128x2xf32>, vector<2x2xf32> -> vector<2x2xf32>
    %cst_5 = arith.constant 1.250000e-01 : f32
    %4 = vector.broadcast %cst_5 : f32 to vector<2x2xf32>
    %5 = arith.mulf %3, %4 : vector<2x2xf32>
    %c0_6 = arith.constant 0 : index
    %c0_7 = arith.constant 0 : index
    %6 = vector.load %arg3[%c0_6, %c0_7] : memref<1x2xf32, #tpu.memory_space<vmem>>, vector<1x2xf32>
    %7 = vector.broadcast %6 : vector<1x2xf32> to vector<2x2xf32>
    %8 = arith.addf %5, %7 : vector<2x2xf32>
    %c0_8 = arith.constant 0 : index
    %c0_9 = arith.constant 0 : index
    %9 = vector.load %arg4[%c0_8, %c0_9] : memref<2x2xf32, #tpu.memory_space<vmem>>, vector<2x2xf32>
    tpu.vector_store %arg4[%c0_8, %c0_9], %8 {strides = array<i32>} : memref<2x2xf32, #tpu.memory_space<vmem>>, vector<2x2xf32>,
    return
  }
  func.func @transform_0(%arg0: i32) -> (i32, i32, i32) {
    %c0_i32 = arith.constant 0 : i32
    %c0_i32_0 = arith.constant 0 : i32
    %c0_i32_1 = arith.constant 0 : i32
    return %arg0, %c0_i32, %c0_i32_0 : i32, i32, i32
  }
  func.func @transform_1(%arg0: i32) -> (i32, i32) {
    %c0_i32 = arith.constant 0 : i32
    %c0_i32_0 = arith.constant 0 : i32
    %c0_i32_1 = arith.constant 0 : i32
    return %c0_i32, %c0_i32_0 : i32, i32
  }
  func.func @transform_2(%arg0: i32) -> (i32, i32) {
    %c0_i32 = arith.constant 0 : i32
    %c0_i32_0 = arith.constant 0 : i32
    %c0_i32_1 = arith.constant 0 : i32
    return %c0_i32, %c0_i32_0 : i32, i32
  }
  func.func @transform_3(%arg0: i32) -> (i32, i32) {
    %c0_i32 = arith.constant 0 : i32
    %c0_i32_0 = arith.constant 0 : i32
    return %arg0, %c0_i32 : i32, i32
  }
}

</mosaic_0001>

<llo_original>
// kernel: tpu_custom_call.1
$region0: #{tpu_custom_call.1}
  #allocation0 [shape = 'u32[]', space=smem, size = 0x4, offset = 0x4, fixed_abs, tag = 'smem constant byte address 0x4 - core index']
  #allocation1 [shape = 'u32[144,128]{1,0:T(1,128)}', space=vmem, size = 0x12000, scoped, tag = 'internal scratch']
  %s0 = inlined_call_operand.vmem [shape: f32[2,8,128], index: 0, kind: input, shape index: {}]
  %s1 = inlined_call_operand.vmem [shape: f32[128,2], index: 1, kind: input, shape index: {}]
  %s2 = inlined_call_operand.vmem [shape: f32[1,2], index: 2, kind: input, shape index: {}]
  %s3 = inlined_call_operand.hbm [shape: f32[2,2], index: 3, kind: output, shape index: {}]
  %s4 = sld [smem:[#allocation0]]
  $region22: #{tpu_custom_call.1} parent=0
    _
  %s6 = ssub.s32 1, %s4
  %s7 = scalar_select 0, %s6, %s4
  $region1: #{tpu_custom_call.1} parent=0
    #allocation2 [shape = 'u8[1024]{0}', space=vmem, size = 0x400, scoped, tag = 'output window, operand 0, single buffered']
    #allocation3 [shape = 's32[1]{0}', space=sflag, size = 0x4, scoped, tag = 'scoped memory for tpu_custom_call.1']
    %8 = vsyncpa [#allocation3], 0
    // Predicated region
    $region2: #{tpu_custom_call.1} parent=1 // pred_check
      _
    $region3: #{tpu_custom_call.1} parent=1 // pred_check_branch
      %10 = sbr.rel (0) target = $region5
    $region4: #{tpu_custom_call.1} parent=1 // pred_region
      _
    $region5: #{tpu_custom_call.1} parent=1 // pred_fallthru
      _
    // Predicated region
    $region6: #{tpu_custom_call.1} parent=1 // pred_check
      _
    $region7: #{tpu_custom_call.1} parent=1 // pred_check_branch
      %12 = sbr.rel (0) target = $region9
    $region8: #{tpu_custom_call.1} parent=1 // pred_region
      _
    $region9: #{tpu_custom_call.1} parent=1 // pred_fallthru
      _
    // Predicated region
    $region10: #{tpu_custom_call.1} parent=1 // pred_check
      _
    $region11: #{tpu_custom_call.1} parent=1 // pred_check_branch
      %14 = sbr.rel (0) target = $region13
    $region12: #{tpu_custom_call.1} parent=1 // pred_region
      _
    $region13: #{tpu_custom_call.1} parent=1 // pred_fallthru
      _
    %v15 = vld [vmem:[%s0] sm:$0xff]
    %v16 = vld [vmem:[%s0 + $0x8] sm:$0xff]
    %v17 = vrot.slane %v15, 4
    %v18 = vadd.f32 %v15, %v17
    %v19 = vrot.slane %v18, 2
    %v20 = vadd.f32 %v18, %v19
    %v21 = vrot.slane %v20, 1
    %v22 = vadd.f32 %v20, %v21
    %v23 = vrot.slane %v16, 4
    %v24 = vadd.f32 %v16, %v23
    %v25 = vrot.slane %v24, 2
    %v26 = vadd.f32 %v24, %v25
    %v27 = vrot.slane %v26, 1
    %v28 = vadd.f32 %v26, %v27
    %v29 = vld [vmem:[%s1] sm:$0xff]
    %v30 = vld [vmem:[%s1 + $0x8] sm:$0xff]
    %v31 = vld [vmem:[%s1 + $0x10] sm:$0xff]
    %v32 = vld [vmem:[%s1 + $0x18] sm:$0xff]
    %v33 = vld [vmem:[%s1 + $0x20] sm:$0xff]
    %v34 = vld [vmem:[%s1 + $0x28] sm:$0xff]
    %v35 = vld [vmem:[%s1 + $0x30] sm:$0xff]
    %v36 = vld [vmem:[%s1 + $0x38] sm:$0xff]
    %v37 = vld [vmem:[%s1 + $0x40] sm:$0xff]
    %v38 = vld [vmem:[%s1 + $0x48] sm:$0xff]
    %v39 = vld [vmem:[%s1 + $0x50] sm:$0xff]
    %v40 = vld [vmem:[%s1 + $0x58] sm:$0xff]
    %v41 = vld [vmem:[%s1 + $0x60] sm:$0xff]
    %v42 = vld [vmem:[%s1 + $0x68] sm:$0xff]
    %v43 = vld [vmem:[%s1 + $0x70] sm:$0xff]
    %v44 = vld [vmem:[%s1 + $0x78] sm:$0xff]
    %vm47 = vcmask 1041409
    %v48 = vsel %vm47, %v28, %v22
    %50 = vmatprep.subr.mxu0 0.0
    %51 = vmatpush1.msra.mxu0 %v44
    %52 = vmatprep.subr.mxu0 0.0
    %53 = vmatpush1.msra.mxu0 %v43
    %54 = vmatprep.subr.mxu0 0.0
    %55 = vmatpush1.msra.mxu0 %v42
    %56 = vmatprep.subr.mxu0 0.0
    %57 = vmatpush1.msra.mxu0 %v41
    %58 = vmatprep.subr.mxu0 0.0
    %59 = vmatpush1.msra.mxu0 %v40
    %60 = vmatprep.subr.mxu0 0.0
    %61 = vmatpush1.msra.mxu0 %v39
    %62 = vmatprep.subr.mxu0 0.0
    %63 = vmatpush1.msra.mxu0 %v38
    %64 = vmatprep.subr.mxu0 0.0
    %65 = vmatpush1.msra.mxu0 %v37
    %66 = vmatprep.subr.mxu0 0.0
    %67 = vmatpush1.msra.mxu0 %v36
    %68 = vmatprep.subr.mxu0 0.0
    %69 = vmatpush1.msra.mxu0 %v35
    %70 = vmatprep.subr.mxu0 0.0
    %71 = vmatpush1.msra.mxu0 %v34
    %72 = vmatprep.subr.mxu0 0.0
    %73 = vmatpush1.msra.mxu0 %v33
    %74 = vmatprep.subr.mxu0 0.0
    %75 = vmatpush1.msra.mxu0 %v32
    %76 = vmatprep.subr.mxu0 0.0
    %77 = vmatpush1.msra.mxu0 %v31
    %78 = vmatprep.subr.mxu0 0.0
    %79 = vmatpush1.msra.mxu0 %v30
    %80 = vmatprep.subr.mxu0 0.0
    %81 = vmatpush1.msra.mxu0 %v29
    %82 = vmatprep.subr.mxu0 0.0
    %83 = vmatpush2.msra.mxu0 0.0
    %84 = vmatprep.subr.mxu0 0.0
    %85 = vmatpush2.msra.mxu0 0.0
    %86 = vmatprep.subr.mxu0 0.0
    %87 = vmatpush2.msra.mxu0 0.0
    %88 = vmatprep.subr.mxu0 0.0
    %89 = vmatpush2.msra.mxu0 0.0
    %90 = vmatprep.subr.mxu0 0.0
    %91 = vmatpush2.msra.mxu0 0.0
    %92 = vmatprep.subr.mxu0 0.0
    %93 = vmatpush2.msra.mxu0 0.0
    %94 = vmatprep.subr.mxu0 0.0
    %95 = vmatpush2.msra.mxu0 0.0
    %96 = vmatprep.subr.mxu0 0.0
    %97 = vmatpush2.msra.mxu0 0.0
    %98 = vmatprep.subr.mxu0 0.0
    %99 = vmatpush2.msra.mxu0 0.0
    %100 = vmatprep.subr.mxu0 0.0
    %101 = vmatpush2.msra.mxu0 0.0
    %102 = vmatprep.subr.mxu0 0.0
    %103 = vmatpush2.msra.mxu0 0.0
    %104 = vmatprep.subr.mxu0 0.0
    %105 = vmatpush2.msra.mxu0 0.0
    %106 = vmatprep.subr.mxu0 0.0
    %107 = vmatpush2.msra.mxu0 0.0
    %108 = vmatprep.subr.mxu0 0.0
    %109 = vmatpush2.msra.mxu0 0.0
    %110 = vmatprep.subr.mxu0 0.0
    %111 = vmatpush2.msra.mxu0 0.0
    %112 = vmatprep.subr.mxu0 0.0
    %113 = vmatpush2.msra.mxu0 0.0
    %114 = vmatprep.mubr.f32.mxu0 0.0
    %115 = vmatmul.mubr.f32.gmra.mxu0 %v48
    %v116 = vpop.f32.mrf.mxu0
    %v117 = vadd.f32 0.0, %v116
    %v118 = vpop.f32.mrf.mxu0
    %119 = vdwg.mxu0
    %v120 = vmul.f32 %v117, 0.125
    %v121 = vld [vmem:[%s2] sm:$0x1]
    %v123 = vlaneseq
    %v124 = vshrl.u32 %v123, 7
    %v125 = vsub.s32 0, %v124
    %v126 = vrot.slane %v121, %v125
    %v128 = vadd.f32 %v120, %v126
    %vm129 = vcmask 9216
    %130 = vst.msk [vmem:[#allocation2] sm:$0x3] %vm129, %v128
    // Predicated region
    $region14: #{tpu_custom_call.1} parent=1 // pred_check
      _
    $region15: #{tpu_custom_call.1} parent=1 // pred_check_branch
      %132 = sbr.rel (0) target = $region17
    $region16: #{tpu_custom_call.1} parent=1 // pred_region
      %s134 = ssub.s32 32, 32
      %135 = vsyncadd [#allocation3], %s134
      %s137 = sshll.u32 [#allocation2], 4
      %s138 = int_to_ptr.vmem [resolvable:$true] %s137
      %140 = dma.vmem_to_hbm [thread:$0]  %s138, 32, %s3, [#allocation3]
    $region17: #{tpu_custom_call.1} parent=1 // pred_fallthru
      _
    // Predicated region
    $region18: #{tpu_custom_call.1} parent=1 // pred_check
      _
    $region19: #{tpu_custom_call.1} parent=1 // pred_check_branch
      %142 = sbr.rel (0) target = $region21
    $region20: #{tpu_custom_call.1} parent=1 // pred_region
      %143 = dma.done [#allocation3], 32
    $region21: #{tpu_custom_call.1} parent=1 // pred_fallthru
      _
    %144 = vsyncpa [#allocation3], 1

</llo_original>
